<compile_context>
chip_gen: v7x
topology: tpu7x:2x2x1
jax: 0.10.0
libtpu: 0.0.40
codegen_flags: <defaults>
</compile_context>

<pallas_src>
import functools

import jax
import jax.numpy as jnp
from jax import lax
from jax.experimental import pallas as pl
from jax.experimental.pallas import tpu as pltpu


def _round_up(x, m):
    return ((x + m - 1) // m) * m


# ---------------------------------------------------------------------------
# Phase 1: conv (one matmul per tile) + per-tile BN partial statistics.
# ---------------------------------------------------------------------------
def _conv_stats_kernel(lhs_ref, w_ref, conv_ref, stats_ref, *, tm, rows, cout_pad):
    # lhs_ref  : (TM, K_pad)        im2col rows for this tile (lane-dense)
    # w_ref    : (K_pad, COUT_PAD)  folded conv weight (taps in contraction dim)
    # conv_ref : (TM, COUT_PAD)     conv output tile (lane-dense store)
    # stats_ref: (8, COUT_PAD)      row 0 = sum, row 1 = sum of squares
    y = jnp.dot(lhs_ref[...], w_ref[...], preferred_element_type=jnp.float32)
    conv_ref[...] = y

    # Mask im2col padding rows so they do not pollute the batch statistics.
    row0 = pl.program_id(0) * tm
    row_ids = row0 + lax.broadcasted_iota(jnp.int32, (tm, 1), 0)
    mask = (row_ids < rows).astype(jnp.float32)          # (TM, 1)
    ym = y * mask
    s = jnp.sum(ym, axis=0, keepdims=True)                # (1, COUT_PAD)
    ss = jnp.sum(ym * y, axis=0, keepdims=True)           # (1, COUT_PAD)
    # Single full (8, 128k) unmasked store for the partials.
    stats_ref[...] = jnp.concatenate(
        [s, ss, jnp.zeros((6, cout_pad), jnp.float32)], axis=0)


# ---------------------------------------------------------------------------
# Phase 2: reduce partials, apply BatchNorm (training-mode batch stats) + ReLU.
# ---------------------------------------------------------------------------
def _bn_relu_kernel(stats_ref, gamma_ref, beta_ref, conv_ref, out_ref,
                    *, num_tiles, count, cout_pad, eps):
    # stats_ref: (num_tiles*8, COUT_PAD) per-tile partials (rows t*8, t*8+1)
    # gamma_ref/beta_ref: (1, COUT_PAD)
    # conv_ref/out_ref  : (TM, COUT_PAD)
    totals = jnp.sum(stats_ref[...].reshape(num_tiles, 8, cout_pad), axis=0)
    inv_count = 1.0 / count                                # static Python float
    mean = totals[0:1, :] * inv_count                      # (1, COUT_PAD)
    ex2 = totals[1:2, :] * inv_count
    var = ex2 - mean * mean                                # biased variance
    inv_std = lax.rsqrt(var + eps)
    scale = gamma_ref[...] * inv_std
    shift = beta_ref[...] - mean * scale
    y = conv_ref[...] * scale + shift
    out_ref[...] = jnp.maximum(y, 0.0)


# ---------------------------------------------------------------------------
# Wrapper: layout glue (im2col, padding) + the two pallas_calls.
# ---------------------------------------------------------------------------
def aspp_module_forward(x_nchw, weight_oihw, gamma, beta,
                        *, padding, dilation, eps=1e-5, tile_rows=256):
    """Forward of _ASPPModule.  x_nchw: (N, Cin, H, W) fp32.
    Returns NCHW output (N, Cout, H, W) fp32 (matches the PyTorch module)."""
    N, Cin, H, W = x_nchw.shape
    Cout, _, KH, KW = weight_oihw.shape

    rows = N * H * W
    K = KH * KW * Cin
    k_pad = _round_up(K, 8)
    cout_pad = _round_up(max(Cout, 128), 128)
    tm = _round_up(min(tile_rows, _round_up(rows, 8)), 8)
    num_tiles = pl.cdiv(rows, tm)
    rows_pad = num_tiles * tm

    # --- wrapper-side glue: NCHW->NHWC, zero pad, im2col, weight fold/pad ----
    x_nhwc = jnp.transpose(x_nchw, (0, 2, 3, 1)).astype(jnp.float32)
    x_pad = jnp.pad(x_nhwc,
                    ((0, 0), (padding, padding), (padding, padding), (0, 0)))
    cols = []
    for kh in range(KH):
        for kw in range(KW):
            patch = x_pad[:, kh * dilation:kh * dilation + H,
                             kw * dilation:kw * dilation + W, :]
            cols.append(patch.reshape(rows, Cin))
    lhs = jnp.concatenate(cols, axis=1)                    # (rows, KH*KW*Cin)
    lhs = jnp.pad(lhs, ((0, rows_pad - rows), (0, k_pad - K)))

    w_hwio = jnp.transpose(weight_oihw, (2, 3, 1, 0)).astype(jnp.float32)
    w2d = w_hwio.reshape(K, Cout)                          # matches im2col order
    w2d = jnp.pad(w2d, ((0, k_pad - K), (0, cout_pad - Cout)))

    gamma_p = jnp.pad(gamma.astype(jnp.float32).reshape(1, Cout),
                      ((0, 0), (0, cout_pad - Cout)))
    beta_p = jnp.pad(beta.astype(jnp.float32).reshape(1, Cout),
                     ((0, 0), (0, cout_pad - Cout)))

    cparams = pltpu.CompilerParams(
        dimension_semantics=("parallel",),
        vmem_limit_bytes=32 * 1024 * 1024,
    )

    # --- phase 1: conv + partial statistics -------------------------------
    conv_kernel = functools.partial(
        _conv_stats_kernel, tm=tm, rows=rows, cout_pad=cout_pad)
    conv_out, stats = pl.pallas_call(
        conv_kernel,
        out_shape=(jax.ShapeDtypeStruct((rows_pad, cout_pad), jnp.float32),
                   jax.ShapeDtypeStruct((num_tiles * 8, cout_pad), jnp.float32)),
        grid=(num_tiles,),
        in_specs=[pl.BlockSpec((tm, k_pad), lambda i: (i, 0)),
                  pl.BlockSpec((k_pad, cout_pad), lambda i: (0, 0))],
        out_specs=(pl.BlockSpec((tm, cout_pad), lambda i: (i, 0)),
                   pl.BlockSpec((8, cout_pad), lambda i: (i, 0))),
        compiler_params=cparams,
    )(lhs, w2d)

    # --- phase 2: finalize BN + ReLU ---------------------------------------
    bn_kernel = functools.partial(
        _bn_relu_kernel, num_tiles=num_tiles, count=float(rows),
        cout_pad=cout_pad, eps=eps)
    out2d = pl.pallas_call(
        bn_kernel,
        out_shape=jax.ShapeDtypeStruct((rows_pad, cout_pad), jnp.float32),
        grid=(num_tiles,),
        in_specs=[pl.BlockSpec((num_tiles * 8, cout_pad), lambda i: (0, 0)),
                  pl.BlockSpec((1, cout_pad), lambda i: (0, 0)),
                  pl.BlockSpec((1, cout_pad), lambda i: (0, 0)),
                  pl.BlockSpec((tm, cout_pad), lambda i: (i, 0))],
        out_specs=pl.BlockSpec((tm, cout_pad), lambda i: (i, 0)),
        compiler_params=cparams,
    )(stats, gamma_p, beta_p, conv_out)

    out = out2d[:rows, :Cout].reshape(N, H, W, Cout)
    return jnp.transpose(out, (0, 3, 1, 2))                # NCHW


# ---------------------------------------------------------------------------
# Pure-JAX reference matching the PyTorch training-mode forward (NCHW).
# ---------------------------------------------------------------------------
def _reference(x_nchw, weight_oihw, gamma, beta, *, padding, dilation, eps=1e-5):
    x_nhwc = jnp.transpose(x_nchw, (0, 2, 3, 1)).astype(jnp.float32)
    w_hwio = jnp.transpose(weight_oihw, (2, 3, 1, 0)).astype(jnp.float32)
    conv = lax.conv_general_dilated(
        x_nhwc, w_hwio, window_strides=(1, 1),
        padding=[(padding, padding), (padding, padding)],
        rhs_dilation=(dilation, dilation),
        dimension_numbers=("NHWC", "HWIO", "NHWC"))
    mean = jnp.mean(conv, axis=(0, 1, 2), keepdims=True)
    var = jnp.mean((conv - mean) ** 2, axis=(0, 1, 2), keepdims=True)
    y = (conv - mean) * lax.rsqrt(var + eps) * gamma.reshape(1, 1, 1, -1) \
        + beta.reshape(1, 1, 1, -1)
    y = jnp.maximum(y, 0.0)
    return jnp.transpose(y, (0, 3, 1, 2))


if __name__ == "__main__":
    # Module config: _ASPPModule(inplanes=4, planes=8, kernel_size=3,
    #                            padding=2, dilation=2)
    inplanes, planes, kernel_size, padding, dilation = 4, 8, 3, 2, 2
    N, H, W = 2, 16, 16

    key = jax.random.PRNGKey(0)
    kx, kw = jax.random.split(key)

    x = jax.random.normal(kx, (N, inplanes, H, W), dtype=jnp.float32)

    # Conv weight: kaiming_normal_ (fan_in = Cin*KH*KW, gain = sqrt(2)).
    fan_in = inplanes * kernel_size * kernel_size
    std = (2.0 / fan_in) ** 0.5
    weight = std * jax.random.normal(
        kw, (planes, inplanes, kernel_size, kernel_size), dtype=jnp.float32)

    # BatchNorm params per _init_weight: weight=1, bias=0.
    gamma = jnp.ones((planes,), dtype=jnp.float32)
    beta = jnp.zeros((planes,), dtype=jnp.float32)

    out = aspp_module_forward(x, weight, gamma, beta,
                              padding=padding, dilation=dilation)
    out = jax.block_until_ready(out)

    ref = _reference(x, weight, gamma, beta, padding=padding, dilation=dilation)
    assert out.shape == (N, planes, H, W)
    assert jnp.allclose(out, ref, rtol=1e-4, atol=1e-4), "mismatch vs reference"

    print("KERNEL_OK")
</pallas_src>

<mosaic_0001>
module attributes {stable_mosaic.version = 11 : i64} {
  func.func @_conv_stats_kernel(%arg0: i32, %arg1: memref<256x40xf32, #tpu.memory_space<vmem>>, %arg2: memref<40x128xf32, #tpu.memory_space<vmem>>, %arg3: memref<256x128xf32, #tpu.memory_space<vmem>>, %arg4: memref<8x128xf32, #tpu.memory_space<vmem>>) attributes {dimension_semantics = [#tpu.dimension_semantics<parallel>], iteration_bounds = array<i64: 2>, scalar_prefetch = 0 : i64, scratch_operands = 0 : i64, tpu.core_type = #tpu.core_type<tc>, window_params = [{transform_indices = @transform_0, window_bounds = array<i64: 256, 40>}, {pipeline_mode = #tpu.pipeline_mode<synchronous>, transform_indices = @transform_1, window_bounds = array<i64: 40, 128>}, {transform_indices = @transform_2, window_bounds = array<i64: 256, 128>}, {transform_indices = @transform_3, window_bounds = array<i64: 8, 128>}]} {
    %c0 = arith.constant 0 : index
    %c0_0 = arith.constant 0 : index
    %0 = vector.load %arg1[%c0, %c0_0] : memref<256x40xf32, #tpu.memory_space<vmem>>, vector<256x40xf32>
    %c0_1 = arith.constant 0 : index
    %c0_2 = arith.constant 0 : index
    %1 = vector.load %arg2[%c0_1, %c0_2] : memref<40x128xf32, #tpu.memory_space<vmem>>, vector<40x128xf32>
    %cst = arith.constant dense<0.000000e+00> : vector<256x128xf32>
    %2 = tpu.matmul %0, %1, %cst {dimension_numbers = #tpu.dot_dimension_numbers<[1], [0], [0], [1], [0, 0, 1, 1], [], []>} : vector<256x40xf32>, vector<40x128xf32>, vector<256x128xf32> -> vector<256x128xf32>
    %c0_3 = arith.constant 0 : index
    %c0_4 = arith.constant 0 : index
    %3 = vector.load %arg3[%c0_3, %c0_4] : memref<256x128xf32, #tpu.memory_space<vmem>>, vector<256x128xf32>
    tpu.vector_store %arg3[%c0_3, %c0_4], %2 {strides = array<i32>} : memref<256x128xf32, #tpu.memory_space<vmem>>, vector<256x128xf32>,
    %c256_i32 = arith.constant 256 : i32
    %4 = arith.muli %arg0, %c256_i32 : i32
    %5 = tpu.iota {dimensions = array<i32: 0>} : vector<256x1xi32>
    %6 = vector.broadcast %4 : i32 to vector<256x1xi32>
    %7 = arith.addi %6, %5 : vector<256x1xi32>
    %c512_i32 = arith.constant 512 : i32
    %8 = vector.broadcast %c512_i32 : i32 to vector<256x1xi32>
    %9 = arith.cmpi slt, %7, %8 : vector<256x1xi32>
    %10 = arith.extui %9 : vector<256x1xi1> to vector<256x1xi32>
    %11 = arith.sitofp %10 : vector<256x1xi32> to vector<256x1xf32>
    %12 = vector.broadcast %11 : vector<256x1xf32> to vector<256x128xf32>
    %13 = arith.mulf %2, %12 : vector<256x128xf32>
    %cst_5 = arith.constant dense<0.000000e+00> : vector<128xf32>
    %14 = vector.multi_reduction <add>, %13, %cst_5 [0] : vector<256x128xf32> to vector<128xf32>
    %15 = vector.shape_cast %14 : vector<128xf32> to vector<1x128xf32>
    %16 = arith.mulf %13, %2 : vector<256x128xf32>
    %cst_6 = arith.constant dense<0.000000e+00> : vector<128xf32>
    %17 = vector.multi_reduction <add>, %16, %cst_6 [0] : vector<256x128xf32> to vector<128xf32>
    %18 = vector.shape_cast %17 : vector<128xf32> to vector<1x128xf32>
    %cst_7 = arith.constant 0.000000e+00 : f32
    %19 = vector.broadcast %cst_7 : f32 to vector<6x128xf32>
    %20 = tpu.concatenate %15, %18, %19 in 0 : vector<1x128xf32>, vector<1x128xf32>, vector<6x128xf32> -> vector<8x128xf32>
    %c0_8 = arith.constant 0 : index
    %c0_9 = arith.constant 0 : index
    %21 = vector.load %arg4[%c0_8, %c0_9] : memref<8x128xf32, #tpu.memory_space<vmem>>, vector<8x128xf32>
    tpu.vector_store %arg4[%c0_8, %c0_9], %20 {strides = array<i32>} : memref<8x128xf32, #tpu.memory_space<vmem>>, vector<8x128xf32>,
    return
  }
  func.func @transform_0(%arg0: i32) -> (i32, i32) {
    %c0_i32 = arith.constant 0 : i32
    %c0_i32_0 = arith.constant 0 : i32
    return %arg0, %c0_i32 : i32, i32
  }
  func.func @transform_1(%arg0: i32) -> (i32, i32) {
    %c0_i32 = arith.constant 0 : i32
    %c0_i32_0 = arith.constant 0 : i32
    %c0_i32_1 = arith.constant 0 : i32
    return %c0_i32, %c0_i32_0 : i32, i32
  }
  func.func @transform_2(%arg0: i32) -> (i32, i32) {
    %c0_i32 = arith.constant 0 : i32
    %c0_i32_0 = arith.constant 0 : i32
    return %arg0, %c0_i32 : i32, i32
  }
  func.func @transform_3(%arg0: i32) -> (i32, i32) {
    %c0_i32 = arith.constant 0 : i32
    %c0_i32_0 = arith.constant 0 : i32
    return %arg0, %c0_i32 : i32, i32
  }
}

</mosaic_0001>

<llo_original>
// kernel: tpu_custom_call.1
$region0: #{tpu_custom_call.1}
  #allocation0 [shape = 'u32[]', space=smem, size = 0x4, offset = 0x4, fixed_abs, tag = 'smem constant byte address 0x4 - core index']
  #allocation1 [shape = 'u32[144,128]{1,0:T(1,128)}', space=vmem, size = 0x12000, scoped, tag = 'internal scratch']
  %s0 = inlined_call_operand.vmem [shape: f32[512,40], index: 0, kind: input, shape index: {}]
  %s1 = inlined_call_operand.vmem [shape: f32[40,128], index: 1, kind: input, shape index: {}]
  %s2 = inlined_call_operand.hbm [shape: f32[512,128], index: 2, kind: output, shape index: {0}]
  %s3 = inlined_call_operand.hbm [shape: f32[16,128], index: 3, kind: output, shape index: {1}]
  %4 = xla_tuple %s2, %s3
  %s5 = sld [smem:[#allocation0]]
  $region49: #{tpu_custom_call.1} parent=0
    _
  %s7 = ssub.s32 1, %s5
  %s8 = scalar_select 0, %s7, %s5
  $region1: #{tpu_custom_call.1} parent=0
    #allocation2 [shape = 'u8[262144]{0}', space=vmem, size = 0x40000, scoped, tag = 'output window, operand 0']
    #allocation3 [shape = 's32[2]{0}', space=sflag, size = 0x8, scoped, tag = 'scoped memory for tpu_custom_call.1']
    #allocation4 [shape = 'u8[8192]{0}', space=vmem, size = 0x2000, scoped, tag = 'output window, operand 1']
    #allocation5 [shape = 's32[2]{0}', space=sflag, size = 0x8, scoped, tag = 'scoped memory for tpu_custom_call.1']
    %9 = vsyncpa [#allocation3], 0
    %s10 = scalar_lea.sflag [#allocation3], 1
    %11 = vsyncpa %s10, 0
    %12 = vsyncpa [#allocation5], 0
    %s13 = scalar_lea.sflag [#allocation5], 1
    %14 = vsyncpa %s13, 0
    loop: start=0, step=1, limit=4
    $region2: #{tpu_custom_call.1} parent=1 // loop_pre_header
      _
    $region3: #{tpu_custom_call.1} parent=1 // loop_header
      %s16 = sphi 0, %s20
      %p17 = scmp.ge.s32.totalorder %s16, 4
      %s26 = sphi 0, %s28
      %s29 = sphi 0, %s26
      %s30 = sphi 0, %s29
      %s46 = sphi 0, %s30
      %s50 = sphi 0, %s50
      %s52 = sphi 0, %s50
      %s53 = sphi 0, %s52
      %s67 = sphi 0, %s53
      %s73 = sphi 0, %s75
      %s76 = sphi 0, %s73
      %s77 = sphi 0, %s76
      %s93 = sphi 0, %s77
      %s99 = sphi 0, %s101
      %s102 = sphi 0, %s99
      %s103 = sphi 0, %s102
      %s119 = sphi 0, %s103
    $region4: #{tpu_custom_call.1} parent=1 // loop_header_branch
      %19 = sbr.rel (%p17) target = $region8
    $region5: #{tpu_custom_call.1} parent=1 // loop_body
      %s21 = ssub.s32 %s16, 1
      %s22 = ssub.s32 %s16, 2
      %s23 = sadd.s32 %s16, 1
      %s24 = ssub.s32 %s16, %s23
      %p25 = scmp.eq.s32.totalorder %s24, 0
      %s27 = sadd.s32 %s26, 1
      %s28 = scalar_select %p25, %s26, %s27
      %p31 = pneg %p25
      %p32 = scmp.eq.s32.totalorder %s16, 1
      %p33 = por %p31, %p32
      %p34 = scmp.ne.s32.totalorder %s26, %s29
      %p35 = scmp.eq.s32.totalorder %s16, 0
      %p36 = por %p34, %p35
      %p37 = scmp.ne.s32.totalorder %s26, %s29
      %p38 = scmp.eq.s32.totalorder %s21, 1
      %p39 = por %p37, %p38
      %p40 = scmp.ne.s32.totalorder %s29, %s30
      %p41 = scmp.eq.s32.totalorder %s21, 0
      %p42 = por %p40, %p41
      %p43 = scmp.ne.s32.totalorder %s29, %s30
      %p44 = scmp.eq.s32.totalorder %s22, 1
      %p45 = por %p43, %p44
      %p47 = scmp.ne.s32.totalorder %s30, %s46
      %p48 = scmp.eq.s32.totalorder %s22, 0
      %p49 = por %p47, %p48
      %s51 = sadd.s32 %s50, 1
      %p54 = scmp.eq.s32.totalorder %s16, 1
      %p55 = scmp.ne.s32.totalorder %s50, %s52
      %p56 = scmp.eq.s32.totalorder %s16, 0
      %p57 = por %p55, %p56
      %p58 = scmp.ne.s32.totalorder %s50, %s52
      %p59 = scmp.eq.s32.totalorder %s21, 1
      %p60 = por %p58, %p59
      %p61 = scmp.ne.s32.totalorder %s52, %s53
      %p62 = scmp.eq.s32.totalorder %s21, 0
      %p63 = por %p61, %p62
      %p64 = scmp.ne.s32.totalorder %s52, %s53
      %p65 = scmp.eq.s32.totalorder %s22, 1
      %p66 = por %p64, %p65
      %p68 = scmp.ne.s32.totalorder %s53, %s67
      %p69 = scmp.eq.s32.totalorder %s22, 0
      %p70 = por %p68, %p69
      %s71 = ssub.s32 %s16, %s23
      %p72 = scmp.eq.s32.totalorder %s71, 0
      %s74 = sadd.s32 %s73, 1
      %s75 = scalar_select %p72, %s73, %s74
      %p78 = pneg %p72
      %p79 = scmp.eq.s32.totalorder %s16, 1
      %p80 = por %p78, %p79
      %p81 = scmp.ne.s32.totalorder %s73, %s76
      %p82 = scmp.eq.s32.totalorder %s16, 0
      %p83 = por %p81, %p82
      %p84 = scmp.ne.s32.totalorder %s73, %s76
      %p85 = scmp.eq.s32.totalorder %s21, 1
      %p86 = por %p84, %p85
      %p87 = scmp.ne.s32.totalorder %s76, %s77
      %p88 = scmp.eq.s32.totalorder %s21, 0
      %p89 = por %p87, %p88
      %p90 = scmp.ne.s32.totalorder %s76, %s77
      %p91 = scmp.eq.s32.totalorder %s22, 1
      %p92 = por %p90, %p91
      %p94 = scmp.ne.s32.totalorder %s77, %s93
      %p95 = scmp.eq.s32.totalorder %s22, 0
      %p96 = por %p94, %p95
      %s97 = ssub.s32 %s16, %s23
      %p98 = scmp.eq.s32.totalorder %s97, 0
      %s100 = sadd.s32 %s99, 1
      %s101 = scalar_select %p98, %s99, %s100
      %p104 = pneg %p98
      %p105 = scmp.eq.s32.totalorder %s16, 1
      %p106 = por %p104, %p105
      %p107 = scmp.ne.s32.totalorder %s99, %s102
      %p108 = scmp.eq.s32.totalorder %s16, 0
      %p109 = por %p107, %p108
      %p110 = scmp.ne.s32.totalorder %s99, %s102
      %p111 = scmp.eq.s32.totalorder %s21, 1
      %p112 = por %p110, %p111
      %p113 = scmp.ne.s32.totalorder %s102, %s103
      %p114 = scmp.eq.s32.totalorder %s21, 0
      %p115 = por %p113, %p114
      %p116 = scmp.ne.s32.totalorder %s102, %s103
      %p117 = scmp.eq.s32.totalorder %s22, 1
      %p118 = por %p116, %p117
      %p120 = scmp.ne.s32.totalorder %s103, %s119
      %p121 = scmp.eq.s32.totalorder %s22, 0
      %p122 = por %p120, %p121
      %p123 = scmp.le.s32.totalorder 1, %s16
      %p124 = scmp.lt.s32.totalorder %s16, 3
      %p125 = pnand %p123, %p124
      %p126 = pneg %p125
      // Predicated region
      $region9: #{tpu_custom_call.1} parent=5 // pred_check
        _
      $region10: #{tpu_custom_call.1} parent=5 // pred_check_branch
        %128 = sbr.rel (%p125) target = $region12
      $region11: #{tpu_custom_call.1} parent=5 // pred_region
        %s129 = ssub.s32 %s16, 1
        // Predicated region
        $region13: #{tpu_custom_call.1} parent=11 // pred_check
          %p130 = pneg %p63
        $region14: #{tpu_custom_call.1} parent=11 // pred_check_branch
          %132 = sbr.rel (%p130) target = $region16
        $region15: #{tpu_custom_call.1} parent=11 // pred_region
          _
        $region16: #{tpu_custom_call.1} parent=11 // pred_fallthru
          _
      $region12: #{tpu_custom_call.1} parent=5 // pred_fallthru
        _
      %p133 = scmp.lt.s32.totalorder %s16, 2
      // Predicated region
      $region17: #{tpu_custom_call.1} parent=5 // pred_check
        %p134 = pneg %p133
      $region18: #{tpu_custom_call.1} parent=5 // pred_check_branch
        %136 = sbr.rel (%p134) target = $region20
      $region19: #{tpu_custom_call.1} parent=5 // pred_region
        // Predicated region
        $region21: #{tpu_custom_call.1} parent=19 // pred_check
          %p137 = pneg %p36
        $region22: #{tpu_custom_call.1} parent=19 // pred_check_branch
          %139 = sbr.rel (%p137) target = $region24
        $region23: #{tpu_custom_call.1} parent=19 // pred_region
          %s140 = smul.u32 32, %s16
          %p141 = scmp.lt.s32.totalorder %s140, 63
          %s142 = scalar_select %p141, %s140, 63
          %s143 = smul.addr %s142, 8
          %s144 = scalar_lea.vmem %s0, %s143
          %s145 = smul.u32 32, %s16
        $region24: #{tpu_custom_call.1} parent=19 // pred_fallthru
          _
      $region20: #{tpu_custom_call.1} parent=5 // pred_fallthru
        _
      %p146 = scmp.le.s32.totalorder 1, %s16
      %p147 = scmp.lt.s32.totalorder %s16, 3
      %p148 = pnand %p146, %p147
      %p149 = pneg %p148
      // Predicated region
      $region25: #{tpu_custom_call.1} parent=5 // pred_check
        _
      $region26: #{tpu_custom_call.1} parent=5 // pred_check_branch
        %151 = sbr.rel (%p148) target = $region28
      $region27: #{tpu_custom_call.1} parent=5 // pred_region
        %s152 = ssub.s32 %s16, 1
        %s153 = smul.u32 32, %s21
        %p154 = scmp.lt.s32.totalorder %s153, 63
        %s155 = scalar_select %p154, %s153, 63
        %s156 = smul.addr %s155, 8
        %s157 = scalar_lea.vmem %s0, %s156
        %p158 = pneg %p42
        %p159 = pneg %p39
        %p160 = pneg %p63
        %p161 = pneg %p60
        %p162 = pneg %p89
        %p163 = pneg %p86
        %s164 = sand.u32 %s76, 1
        %s165 = scalar_lea.sflag [#allocation3], %s164
        %s166 = sand.u32 %s76, 1
        %s167 = smul.addr %s166, 256
        %s168 = scalar_lea.vmem [#allocation2], %s167
        %p169 = pneg %p115
        %p170 = pneg %p112
        %s171 = sand.u32 %s102, 1
        %s172 = scalar_lea.sflag [#allocation5], %s171
        %s173 = sand.u32 %s102, 1
        %s174 = smul.addr %s173, 8
        %s175 = scalar_lea.vmem [#allocation4], %s174
        %s176 = smul.u32 32, %s21
        %p177 = scmp.lt.s32.totalorder %s176, 63
        %s178 = scalar_select %p177, %s176, 63
        %s179 = smul.addr %s178, 8
        %s180 = scalar_lea.vmem %s0, %s179
        %s181 = smul.u32 32, %s21
        %s182 = smul.u32 32, %s21
        %v183 = vld [vmem:[%s180] sm:$0xff]
        %v184 = vld [vmem:[%s180 + $0x8] sm:$0xff]
        %v185 = vld [vmem:[%s180 + $0x10] sm:$0xff]
        %v186 = vld [vmem:[%s180 + $0x18] sm:$0xff]
        %v187 = vld [vmem:[%s180 + $0x20] sm:$0xff]
        %v188 = vld [vmem:[%s180 + $0x28] sm:$0xff]
        %v189 = vld [vmem:[%s180 + $0x30] sm:$0xff]
        %v190 = vld [vmem:[%s180 + $0x38] sm:$0xff]
        %v191 = vld [vmem:[%s180 + $0x40] sm:$0xff]
        %v192 = vld [vmem:[%s180 + $0x48] sm:$0xff]
        %v193 = vld [vmem:[%s180 + $0x50] sm:$0xff]
        %v194 = vld [vmem:[%s180 + $0x58] sm:$0xff]
        %v195 = vld [vmem:[%s180 + $0x60] sm:$0xff]
        %v196 = vld [vmem:[%s180 + $0x68] sm:$0xff]
        %v197 = vld [vmem:[%s180 + $0x70] sm:$0xff]
        %v198 = vld [vmem:[%s180 + $0x78] sm:$0xff]
        %v199 = vld [vmem:[%s180 + $0x80] sm:$0xff]
        %v200 = vld [vmem:[%s180 + $0x88] sm:$0xff]
        %v201 = vld [vmem:[%s180 + $0x90] sm:$0xff]
        %v202 = vld [vmem:[%s180 + $0x98] sm:$0xff]
        %v203 = vld [vmem:[%s180 + $0xa0] sm:$0xff]
        %v204 = vld [vmem:[%s180 + $0xa8] sm:$0xff]
        %v205 = vld [vmem:[%s180 + $0xb0] sm:$0xff]
        %v206 = vld [vmem:[%s180 + $0xb8] sm:$0xff]
        %v207 = vld [vmem:[%s180 + $0xc0] sm:$0xff]
        %v208 = vld [vmem:[%s180 + $0xc8] sm:$0xff]
        %v209 = vld [vmem:[%s180 + $0xd0] sm:$0xff]
        %v210 = vld [vmem:[%s180 + $0xd8] sm:$0xff]
        %v211 = vld [vmem:[%s180 + $0xe0] sm:$0xff]
        %v212 = vld [vmem:[%s180 + $0xe8] sm:$0xff]
        %v213 = vld [vmem:[%s180 + $0xf0] sm:$0xff]
        %v214 = vld [vmem:[%s180 + $0xf8] sm:$0xff]
        %v215 = vld [vmem:[%s1] sm:$0xff]
        %v216 = vld [vmem:[%s1 + $0x8] sm:$0xff]
        %v217 = vld [vmem:[%s1 + $0x10] sm:$0xff]
        %v218 = vld [vmem:[%s1 + $0x18] sm:$0xff]
        %v219 = vld [vmem:[%s1 + $0x20] sm:$0xff]
        %vm220 = vcmask 326656
        %v222 = vsel %vm220, %v183, 0
        %v225 = vsel %vm220, %v184, 0
        %v228 = vsel %vm220, %v185, 0
        %v231 = vsel %vm220, %v186, 0
        %v234 = vsel %vm220, %v187, 0
        %v237 = vsel %vm220, %v188, 0
        %v240 = vsel %vm220, %v189, 0
        %v243 = vsel %vm220, %v190, 0
        %v246 = vsel %vm220, %v191, 0
        %v249 = vsel %vm220, %v192, 0
        %v252 = vsel %vm220, %v193, 0
        %v255 = vsel %vm220, %v194, 0
        %v258 = vsel %vm220, %v195, 0
        %v261 = vsel %vm220, %v196, 0
        %v264 = vsel %vm220, %v197, 0
        %v267 = vsel %vm220, %v198, 0
        %v270 = vsel %vm220, %v199, 0
        %v273 = vsel %vm220, %v200, 0
        %v276 = vsel %vm220, %v201, 0
        %v279 = vsel %vm220, %v202, 0
        %v282 = vsel %vm220, %v203, 0
        %v285 = vsel %vm220, %v204, 0
        %v288 = vsel %vm220, %v205, 0
        %v291 = vsel %vm220, %v206, 0
        %v294 = vsel %vm220, %v207, 0
        %v297 = vsel %vm220, %v208, 0
        %v300 = vsel %vm220, %v209, 0
        %v303 = vsel %vm220, %v210, 0
        %v306 = vsel %vm220, %v211, 0
        %v309 = vsel %vm220, %v212, 0
        %v312 = vsel %vm220, %v213, 0
        %v315 = vsel %vm220, %v214, 0
        %317 = vmatprep.subr.mxu0 0.0
        %318 = vmatpush1.msra.mxu0 %v215
        %319 = vmatprep.subr.mxu0 0.0
        %320 = vmatpush1.msra.mxu0 %v216
        %321 = vmatprep.subr.mxu0 0.0
        %322 = vmatpush1.msra.mxu0 %v217
        %323 = vmatprep.subr.mxu0 0.0
        %324 = vmatpush1.msra.mxu0 %v218
        %325 = vmatprep.subr.mxu0 0.0
        %326 = vmatpush1.msra.mxu0 %v219
        %327 = vmatprep.subr.mxu0 0.0
        %328 = vmatpush1.msra.mxu0 0.0
        %329 = vmatprep.subr.mxu0 0.0
        %330 = vmatpush1.msra.mxu0 0.0
        %331 = vmatprep.subr.mxu0 0.0
        %332 = vmatpush1.msra.mxu0 0.0
        %333 = vmatprep.subr.mxu0 0.0
        %334 = vmatpush1.msra.mxu0 0.0
        %335 = vmatprep.subr.mxu0 0.0
        %336 = vmatpush1.msra.mxu0 0.0
        %337 = vmatprep.subr.mxu0 0.0
        %338 = vmatpush1.msra.mxu0 0.0
        %339 = vmatprep.subr.mxu0 0.0
        %340 = vmatpush1.msra.mxu0 0.0
        %341 = vmatprep.subr.mxu0 0.0
        %342 = vmatpush1.msra.mxu0 0.0
        %343 = vmatprep.subr.mxu0 0.0
        %344 = vmatpush1.msra.mxu0 0.0
        %345 = vmatprep.subr.mxu0 0.0
        %346 = vmatpush1.msra.mxu0 0.0
        %347 = vmatprep.subr.mxu0 0.0
        %348 = vmatpush1.msra.mxu0 0.0
        %349 = vmatprep.subr.mxu0 0.0
        %350 = vmatpush1.msra.mxu0 0.0
        %351 = vmatprep.subr.mxu0 0.0
        %352 = vmatpush1.msra.mxu0 0.0
        %353 = vmatprep.subr.mxu0 0.0
        %354 = vmatpush1.msra.mxu0 0.0
        %355 = vmatprep.subr.mxu0 0.0
        %356 = vmatpush1.msra.mxu0 0.0
        %357 = vmatprep.subr.mxu0 0.0
        %358 = vmatpush1.msra.mxu0 0.0
        %359 = vmatprep.subr.mxu0 0.0
        %360 = vmatpush1.msra.mxu0 0.0
        %361 = vmatprep.subr.mxu0 0.0
        %362 = vmatpush1.msra.mxu0 0.0
        %363 = vmatprep.subr.mxu0 0.0
        %364 = vmatpush1.msra.mxu0 0.0
        %365 = vmatprep.subr.mxu0 0.0
        %366 = vmatpush1.msra.mxu0 0.0
        %367 = vmatprep.subr.mxu0 0.0
        %368 = vmatpush1.msra.mxu0 0.0
        %369 = vmatprep.subr.mxu0 0.0
        %370 = vmatpush1.msra.mxu0 0.0
        %371 = vmatprep.subr.mxu0 0.0
        %372 = vmatpush1.msra.mxu0 0.0
        %373 = vmatprep.subr.mxu0 0.0
        %374 = vmatpush1.msra.mxu0 0.0
        %375 = vmatprep.subr.mxu0 0.0
        %376 = vmatpush1.msra.mxu0 0.0
        %377 = vmatprep.subr.mxu0 0.0
        %378 = vmatpush1.msra.mxu0 0.0
        %379 = vmatprep.subr.mxu0 0.0
        %380 = vmatpush1.msra.mxu0 0.0
        %381 = vmatprep.mubr.f32.mxu0 0.0
        %382 = vmatmul.mubr.f32.gmra.mrb[0].mxu0 %v222
        %v383 = vpop.f32.mrb[0].mxu0
        %v384 = vadd.f32 0.0, %v383
        %v385 = vpop.f32.mrb[0].mxu0
        %386 = vmatprep.mubr.f32.mxu0 0.0
        %387 = vmatmul.mubr.f32.gmra.mrb[0].mxu0 %v225
        %v388 = vpop.f32.mrb[0].mxu0
        %v389 = vadd.f32 0.0, %v388
        %v390 = vpop.f32.mrb[0].mxu0
        %391 = vmatprep.mubr.f32.mxu0 0.0
        %392 = vmatmul.mubr.f32.gmra.mrb[0].mxu0 %v228
        %v393 = vpop.f32.mrb[0].mxu0
        %v394 = vadd.f32 0.0, %v393
        %v395 = vpop.f32.mrb[0].mxu0
        %396 = vmatprep.mubr.f32.mxu0 0.0
        %397 = vmatmul.mubr.f32.gmra.mrb[0].mxu0 %v231
        %v398 = vpop.f32.mrb[0].mxu0
        %v399 = vadd.f32 0.0, %v398
        %v400 = vpop.f32.mrb[0].mxu0
        %401 = vmatprep.mubr.f32.mxu0 0.0
        %402 = vmatmul.mubr.f32.gmra.mrb[0].mxu0 %v234
        %v403 = vpop.f32.mrb[0].mxu0
        %v404 = vadd.f32 0.0, %v403
        %v405 = vpop.f32.mrb[0].mxu0
        %406 = vmatprep.mubr.f32.mxu0 0.0
        %407 = vmatmul.mubr.f32.gmra.mrb[0].mxu0 %v237
        %v408 = vpop.f32.mrb[0].mxu0
        %v409 = vadd.f32 0.0, %v408
        %v410 = vpop.f32.mrb[0].mxu0
        %411 = vmatprep.mubr.f32.mxu0 0.0
        %412 = vmatmul.mubr.f32.gmra.mrb[0].mxu0 %v240
        %v413 = vpop.f32.mrb[0].mxu0
        %v414 = vadd.f32 0.0, %v413
        %v415 = vpop.f32.mrb[0].mxu0
        %416 = vmatprep.mubr.f32.mxu0 0.0
        %417 = vmatmul.mubr.f32.gmra.mrb[0].mxu0 %v243
        %v418 = vpop.f32.mrb[0].mxu0
        %v419 = vadd.f32 0.0, %v418
        %v420 = vpop.f32.mrb[0].mxu0
        %421 = vmatprep.mubr.f32.mxu0 0.0
        %422 = vmatmul.mubr.f32.gmra.mrb[0].mxu0 %v246
        %v423 = vpop.f32.mrb[0].mxu0
        %v424 = vadd.f32 0.0, %v423
        %v425 = vpop.f32.mrb[0].mxu0
        %426 = vmatprep.mubr.f32.mxu0 0.0
        %427 = vmatmul.mubr.f32.gmra.mrb[0].mxu0 %v249
        %v428 = vpop.f32.mrb[0].mxu0
        %v429 = vadd.f32 0.0, %v428
        %v430 = vpop.f32.mrb[0].mxu0
        %431 = vmatprep.mubr.f32.mxu0 0.0
        %432 = vmatmul.mubr.f32.gmra.mrb[0].mxu0 %v252
        %v433 = vpop.f32.mrb[0].mxu0
        %v434 = vadd.f32 0.0, %v433
        %v435 = vpop.f32.mrb[0].mxu0
        %436 = vmatprep.mubr.f32.mxu0 0.0
        %437 = vmatmul.mubr.f32.gmra.mrb[0].mxu0 %v255
        %v438 = vpop.f32.mrb[0].mxu0
        %v439 = vadd.f32 0.0, %v438
        %v440 = vpop.f32.mrb[0].mxu0
        %441 = vmatprep.mubr.f32.mxu0 0.0
        %442 = vmatmul.mubr.f32.gmra.mrb[0].mxu0 %v258
        %v443 = vpop.f32.mrb[0].mxu0
        %v444 = vadd.f32 0.0, %v443
        %v445 = vpop.f32.mrb[0].mxu0
        %446 = vmatprep.mubr.f32.mxu0 0.0
        %447 = vmatmul.mubr.f32.gmra.mrb[0].mxu0 %v261
        %v448 = vpop.f32.mrb[0].mxu0
        %v449 = vadd.f32 0.0, %v448
        %v450 = vpop.f32.mrb[0].mxu0
        %451 = vmatprep.mubr.f32.mxu0 0.0
        %452 = vmatmul.mubr.f32.gmra.mrb[0].mxu0 %v264
        %v453 = vpop.f32.mrb[0].mxu0
        %v454 = vadd.f32 0.0, %v453
        %v455 = vpop.f32.mrb[0].mxu0
        %456 = vmatprep.mubr.f32.mxu0 0.0
        %457 = vmatmul.mubr.f32.gmra.mrb[0].mxu0 %v267
        %v458 = vpop.f32.mrb[0].mxu0
        %v459 = vadd.f32 0.0, %v458
        %v460 = vpop.f32.mrb[0].mxu0
        %461 = vmatprep.mubr.f32.mxu0 0.0
        %462 = vmatmul.mubr.f32.gmra.mrb[0].mxu0 %v270
        %v463 = vpop.f32.mrb[0].mxu0
        %v464 = vadd.f32 0.0, %v463
        %v465 = vpop.f32.mrb[0].mxu0
        %466 = vmatprep.mubr.f32.mxu0 0.0
        %467 = vmatmul.mubr.f32.gmra.mrb[0].mxu0 %v273
        %v468 = vpop.f32.mrb[0].mxu0
        %v469 = vadd.f32 0.0, %v468
        %v470 = vpop.f32.mrb[0].mxu0
        %471 = vmatprep.mubr.f32.mxu0 0.0
        %472 = vmatmul.mubr.f32.gmra.mrb[0].mxu0 %v276
        %v473 = vpop.f32.mrb[0].mxu0
        %v474 = vadd.f32 0.0, %v473
        %v475 = vpop.f32.mrb[0].mxu0
        %476 = vmatprep.mubr.f32.mxu0 0.0
        %477 = vmatmul.mubr.f32.gmra.mrb[0].mxu0 %v279
        %v478 = vpop.f32.mrb[0].mxu0
        %v479 = vadd.f32 0.0, %v478
        %v480 = vpop.f32.mrb[0].mxu0
        %481 = vmatprep.mubr.f32.mxu0 0.0
        %482 = vmatmul.mubr.f32.gmra.mrb[0].mxu0 %v282
        %v483 = vpop.f32.mrb[0].mxu0
        %v484 = vadd.f32 0.0, %v483
        %v485 = vpop.f32.mrb[0].mxu0
        %486 = vmatprep.mubr.f32.mxu0 0.0
        %487 = vmatmul.mubr.f32.gmra.mrb[0].mxu0 %v285
        %v488 = vpop.f32.mrb[0].mxu0
        %v489 = vadd.f32 0.0, %v488
        %v490 = vpop.f32.mrb[0].mxu0
        %491 = vmatprep.mubr.f32.mxu0 0.0
        %492 = vmatmul.mubr.f32.gmra.mrb[0].mxu0 %v288
        %v493 = vpop.f32.mrb[0].mxu0
        %v494 = vadd.f32 0.0, %v493
        %v495 = vpop.f32.mrb[0].mxu0
        %496 = vmatprep.mubr.f32.mxu0 0.0
        %497 = vmatmul.mubr.f32.gmra.mrb[0].mxu0 %v291
        %v498 = vpop.f32.mrb[0].mxu0
        %v499 = vadd.f32 0.0, %v498
        %v500 = vpop.f32.mrb[0].mxu0
        %501 = vmatprep.mubr.f32.mxu0 0.0
        %502 = vmatmul.mubr.f32.gmra.mrb[0].mxu0 %v294
        %v503 = vpop.f32.mrb[0].mxu0
        %v504 = vadd.f32 0.0, %v503
        %v505 = vpop.f32.mrb[0].mxu0
        %506 = vmatprep.mubr.f32.mxu0 0.0
        %507 = vmatmul.mubr.f32.gmra.mrb[0].mxu0 %v297
        %v508 = vpop.f32.mrb[0].mxu0
        %v509 = vadd.f32 0.0, %v508
        %v510 = vpop.f32.mrb[0].mxu0
        %511 = vmatprep.mubr.f32.mxu0 0.0
        %512 = vmatmul.mubr.f32.gmra.mrb[0].mxu0 %v300
        %v513 = vpop.f32.mrb[0].mxu0
        %v514 = vadd.f32 0.0, %v513
        %v515 = vpop.f32.mrb[0].mxu0
        %516 = vmatprep.mubr.f32.mxu0 0.0
        %517 = vmatmul.mubr.f32.gmra.mrb[0].mxu0 %v303
        %v518 = vpop.f32.mrb[0].mxu0
        %v519 = vadd.f32 0.0, %v518
        %v520 = vpop.f32.mrb[0].mxu0
        %521 = vmatprep.mubr.f32.mxu0 0.0
        %522 = vmatmul.mubr.f32.gmra.mrb[0].mxu0 %v306
        %v523 = vpop.f32.mrb[0].mxu0
        %v524 = vadd.f32 0.0, %v523
        %v525 = vpop.f32.mrb[0].mxu0
        %526 = vmatprep.mubr.f32.mxu0 0.0
        %527 = vmatmul.mubr.f32.gmra.mrb[0].mxu0 %v309
        %v528 = vpop.f32.mrb[0].mxu0
        %v529 = vadd.f32 0.0, %v528
        %v530 = vpop.f32.mrb[0].mxu0
        %531 = vmatprep.mubr.f32.mxu0 0.0
        %532 = vmatmul.mubr.f32.gmra.mrb[0].mxu0 %v312
        %v533 = vpop.f32.mrb[0].mxu0
        %v534 = vadd.f32 0.0, %v533
        %v535 = vpop.f32.mrb[0].mxu0
        %536 = vmatprep.mubr.f32.mxu0 0.0
        %537 = vmatmul.mubr.f32.gmra.mrb[0].mxu0 %v315
        %v538 = vpop.f32.mrb[0].mxu0
        %v539 = vadd.f32 0.0, %v538
        %v540 = vpop.f32.mrb[0].mxu0
        %541 = vdwg.mxu0
        %542 = vst [vmem:[%s168] sm:$0xff] %v384
        %543 = vst [vmem:[%s168 + $0x8] sm:$0xff] %v389
        %544 = vst [vmem:[%s168 + $0x10] sm:$0xff] %v394
        %545 = vst [vmem:[%s168 + $0x18] sm:$0xff] %v399
        %546 = vst [vmem:[%s168 + $0x20] sm:$0xff] %v404
        %547 = vst [vmem:[%s168 + $0x28] sm:$0xff] %v409
        %548 = vst [vmem:[%s168 + $0x30] sm:$0xff] %v414
        %549 = vst [vmem:[%s168 + $0x38] sm:$0xff] %v419
        %550 = vst [vmem:[%s168 + $0x40] sm:$0xff] %v424
        %551 = vst [vmem:[%s168 + $0x48] sm:$0xff] %v429
        %552 = vst [vmem:[%s168 + $0x50] sm:$0xff] %v434
        %553 = vst [vmem:[%s168 + $0x58] sm:$0xff] %v439
        %554 = vst [vmem:[%s168 + $0x60] sm:$0xff] %v444
        %555 = vst [vmem:[%s168 + $0x68] sm:$0xff] %v449
        %556 = vst [vmem:[%s168 + $0x70] sm:$0xff] %v454
        %557 = vst [vmem:[%s168 + $0x78] sm:$0xff] %v459
        %558 = vst [vmem:[%s168 + $0x80] sm:$0xff] %v464
        %559 = vst [vmem:[%s168 + $0x88] sm:$0xff] %v469
        %560 = vst [vmem:[%s168 + $0x90] sm:$0xff] %v474
        %561 = vst [vmem:[%s168 + $0x98] sm:$0xff] %v479
        %562 = vst [vmem:[%s168 + $0xa0] sm:$0xff] %v484
        %563 = vst [vmem:[%s168 + $0xa8] sm:$0xff] %v489
        %564 = vst [vmem:[%s168 + $0xb0] sm:$0xff] %v494
        %565 = vst [vmem:[%s168 + $0xb8] sm:$0xff] %v499
        %566 = vst [vmem:[%s168 + $0xc0] sm:$0xff] %v504
        %567 = vst [vmem:[%s168 + $0xc8] sm:$0xff] %v509
        %568 = vst [vmem:[%s168 + $0xd0] sm:$0xff] %v514
        %569 = vst [vmem:[%s168 + $0xd8] sm:$0xff] %v519
        %570 = vst [vmem:[%s168 + $0xe0] sm:$0xff] %v524
        %571 = vst [vmem:[%s168 + $0xe8] sm:$0xff] %v529
        %572 = vst [vmem:[%s168 + $0xf0] sm:$0xff] %v534
        %573 = vst [vmem:[%s168 + $0xf8] sm:$0xff] %v539
        %s574 = smul.u32 %s21, 256
        %v575 = vlaneseq
        %v576 = vshrl.u32 %v575, 7
        %v577 = vadd.s32 %v576, 8
        %v578 = vadd.s32 %v576, 16
        %v579 = vadd.s32 %v576, 24
        %v580 = vadd.s32 %v576, 32
        %v581 = vadd.s32 %v576, 40
        %v582 = vadd.s32 %v576, 48
        %v583 = vadd.s32 %v576, 56
        %v584 = vadd.s32 %v576, 64
        %v585 = vadd.s32 %v576, 72
        %v586 = vadd.s32 %v576, 80
        %v587 = vadd.s32 %v576, 88
        %v588 = vadd.s32 %v576, 96
        %v589 = vadd.s32 %v576, 104
        %v590 = vadd.s32 %v576, 112
        %v591 = vadd.s32 %v576, 120
        %v592 = vadd.s32 %v576, 128
        %v593 = vadd.s32 %v576, 136
        %v594 = vadd.s32 %v576, 144
        %v595 = vadd.s32 %v576, 152
        %v596 = vadd.s32 %v576, 160
        %v597 = vadd.s32 %v576, 168
        %v598 = vadd.s32 %v576, 176
        %v599 = vadd.s32 %v576, 184
        %v600 = vadd.s32 %v576, 192
        %v601 = vadd.s32 %v576, 200
        %v602 = vadd.s32 %v576, 208
        %v603 = vadd.s32 %v576, 216
        %v604 = vadd.s32 %v576, 224
        %v605 = vadd.s32 %v576, 232
        %v606 = vadd.s32 %v576, 240
        %v607 = vadd.s32 %v576, 248
        %v608 = vstv %s574
        %v609 = vadd.s32 %v608, %v576
        %v610 = vadd.s32 %v608, %v577
        %v611 = vadd.s32 %v608, %v578
        %v612 = vadd.s32 %v608, %v579
        %v613 = vadd.s32 %v608, %v580
        %v614 = vadd.s32 %v608, %v581
        %v615 = vadd.s32 %v608, %v582
        %v616 = vadd.s32 %v608, %v583
        %v617 = vadd.s32 %v608, %v584
        %v618 = vadd.s32 %v608, %v585
        %v619 = vadd.s32 %v608, %v586
        %v620 = vadd.s32 %v608, %v587
        %v621 = vadd.s32 %v608, %v588
        %v622 = vadd.s32 %v608, %v589
        %v623 = vadd.s32 %v608, %v590
        %v624 = vadd.s32 %v608, %v591
        %v625 = vadd.s32 %v608, %v592
        %v626 = vadd.s32 %v608, %v593
        %v627 = vadd.s32 %v608, %v594
        %v628 = vadd.s32 %v608, %v595
        %v629 = vadd.s32 %v608, %v596
        %v630 = vadd.s32 %v608, %v597
        %v631 = vadd.s32 %v608, %v598
        %v632 = vadd.s32 %v608, %v599
        %v633 = vadd.s32 %v608, %v600
        %v634 = vadd.s32 %v608, %v601
        %v635 = vadd.s32 %v608, %v602
        %v636 = vadd.s32 %v608, %v603
        %v637 = vadd.s32 %v608, %v604
        %v638 = vadd.s32 %v608, %v605
        %v639 = vadd.s32 %v608, %v606
        %v640 = vadd.s32 %v608, %v607
        %vm641 = vcmp.lt.s32.totalorder %v609, 512
        %vm642 = vcmp.lt.s32.totalorder %v610, 512
        %vm643 = vcmp.lt.s32.totalorder %v611, 512
        %vm644 = vcmp.lt.s32.totalorder %v612, 512
        %vm645 = vcmp.lt.s32.totalorder %v613, 512
        %vm646 = vcmp.lt.s32.totalorder %v614, 512
        %vm647 = vcmp.lt.s32.totalorder %v615, 512
        %vm648 = vcmp.lt.s32.totalorder %v616, 512
        %vm649 = vcmp.lt.s32.totalorder %v617, 512
        %vm650 = vcmp.lt.s32.totalorder %v618, 512
        %vm651 = vcmp.lt.s32.totalorder %v619, 512
        %vm652 = vcmp.lt.s32.totalorder %v620, 512
        %vm653 = vcmp.lt.s32.totalorder %v621, 512
        %vm654 = vcmp.lt.s32.totalorder %v622, 512
        %vm655 = vcmp.lt.s32.totalorder %v623, 512
        %vm656 = vcmp.lt.s32.totalorder %v624, 512
        %vm657 = vcmp.lt.s32.totalorder %v625, 512
        %vm658 = vcmp.lt.s32.totalorder %v626, 512
        %vm659 = vcmp.lt.s32.totalorder %v627, 512
        %vm660 = vcmp.lt.s32.totalorder %v628, 512
        %vm661 = vcmp.lt.s32.totalorder %v629, 512
        %vm662 = vcmp.lt.s32.totalorder %v630, 512
        %vm663 = vcmp.lt.s32.totalorder %v631, 512
        %vm664 = vcmp.lt.s32.totalorder %v632, 512
        %vm665 = vcmp.lt.s32.totalorder %v633, 512
        %vm666 = vcmp.lt.s32.totalorder %v634, 512
        %vm667 = vcmp.lt.s32.totalorder %v635, 512
        %vm668 = vcmp.lt.s32.totalorder %v636, 512
        %vm669 = vcmp.lt.s32.totalorder %v637, 512
        %vm670 = vcmp.lt.s32.totalorder %v638, 512
        %vm671 = vcmp.lt.s32.totalorder %v639, 512
        %vm672 = vcmp.lt.s32.totalorder %v640, 512
        %v673 = vsel %vm641, 1, 0
        %v674 = vsel %vm642, 1, 0
        %v675 = vsel %vm643, 1, 0
        %v676 = vsel %vm644, 1, 0
        %v677 = vsel %vm645, 1, 0
        %v678 = vsel %vm646, 1, 0
        %v679 = vsel %vm647, 1, 0
        %v680 = vsel %vm648, 1, 0
        %v681 = vsel %vm649, 1, 0
        %v682 = vsel %vm650, 1, 0
        %v683 = vsel %vm651, 1, 0
        %v684 = vsel %vm652, 1, 0
        %v685 = vsel %vm653, 1, 0
        %v686 = vsel %vm654, 1, 0
        %v687 = vsel %vm655, 1, 0
        %v688 = vsel %vm656, 1, 0
        %v689 = vsel %vm657, 1, 0
        %v690 = vsel %vm658, 1, 0
        %v691 = vsel %vm659, 1, 0
        %v692 = vsel %vm660, 1, 0
        %v693 = vsel %vm661, 1, 0
        %v694 = vsel %vm662, 1, 0
        %v695 = vsel %vm663, 1, 0
        %v696 = vsel %vm664, 1, 0
        %v697 = vsel %vm665, 1, 0
        %v698 = vsel %vm666, 1, 0
        %v699 = vsel %vm667, 1, 0
        %v700 = vsel %vm668, 1, 0
        %v701 = vsel %vm669, 1, 0
        %v702 = vsel %vm670, 1, 0
        %v703 = vsel %vm671, 1, 0
        %v704 = vsel %vm672, 1, 0
        %v705 = vcvt.s32.f32 %v673
        %v706 = vcvt.s32.f32 %v674
        %v707 = vcvt.s32.f32 %v675
        %v708 = vcvt.s32.f32 %v676
        %v709 = vcvt.s32.f32 %v677
        %v710 = vcvt.s32.f32 %v678
        %v711 = vcvt.s32.f32 %v679
        %v712 = vcvt.s32.f32 %v680
        %v713 = vcvt.s32.f32 %v681
        %v714 = vcvt.s32.f32 %v682
        %v715 = vcvt.s32.f32 %v683
        %v716 = vcvt.s32.f32 %v684
        %v717 = vcvt.s32.f32 %v685
        %v718 = vcvt.s32.f32 %v686
        %v719 = vcvt.s32.f32 %v687
        %v720 = vcvt.s32.f32 %v688
        %v721 = vcvt.s32.f32 %v689
        %v722 = vcvt.s32.f32 %v690
        %v723 = vcvt.s32.f32 %v691
        %v724 = vcvt.s32.f32 %v692
        %v725 = vcvt.s32.f32 %v693
        %v726 = vcvt.s32.f32 %v694
        %v727 = vcvt.s32.f32 %v695
        %v728 = vcvt.s32.f32 %v696
        %v729 = vcvt.s32.f32 %v697
        %v730 = vcvt.s32.f32 %v698
        %v731 = vcvt.s32.f32 %v699
        %v732 = vcvt.s32.f32 %v700
        %v733 = vcvt.s32.f32 %v701
        %v734 = vcvt.s32.f32 %v702
        %v735 = vcvt.s32.f32 %v703
        %v736 = vcvt.s32.f32 %v704
        %v737 = vmul.f32 %v384, %v705
        %v738 = vmul.f32 %v389, %v706
        %v739 = vmul.f32 %v394, %v707
        %v740 = vmul.f32 %v399, %v708
        %v741 = vmul.f32 %v404, %v709
        %v742 = vmul.f32 %v409, %v710
        %v743 = vmul.f32 %v414, %v711
        %v744 = vmul.f32 %v419, %v712
        %v745 = vmul.f32 %v424, %v713
        %v746 = vmul.f32 %v429, %v714
        %v747 = vmul.f32 %v434, %v715
        %v748 = vmul.f32 %v439, %v716
        %v749 = vmul.f32 %v444, %v717
        %v750 = vmul.f32 %v449, %v718
        %v751 = vmul.f32 %v454, %v719
        %v752 = vmul.f32 %v459, %v720
        %v753 = vmul.f32 %v464, %v721
        %v754 = vmul.f32 %v469, %v722
        %v755 = vmul.f32 %v474, %v723
        %v756 = vmul.f32 %v479, %v724
        %v757 = vmul.f32 %v484, %v725
        %v758 = vmul.f32 %v489, %v726
        %v759 = vmul.f32 %v494, %v727
        %v760 = vmul.f32 %v499, %v728
        %v761 = vmul.f32 %v504, %v729
        %v762 = vmul.f32 %v509, %v730
        %v763 = vmul.f32 %v514, %v731
        %v764 = vmul.f32 %v519, %v732
        %v765 = vmul.f32 %v524, %v733
        %v766 = vmul.f32 %v529, %v734
        %v767 = vmul.f32 %v534, %v735
        %v768 = vmul.f32 %v539, %v736
        %v769 = vadd.f32 %v737, %v738
        %v770 = vadd.f32 %v769, %v739
        %v771 = vadd.f32 %v770, %v740
        %v772 = vadd.f32 %v771, %v741
        %v773 = vadd.f32 %v772, %v742
        %v774 = vadd.f32 %v773, %v743
        %v775 = vadd.f32 %v774, %v744
        %v776 = vadd.f32 %v775, %v745
        %v777 = vadd.f32 %v776, %v746
        %v778 = vadd.f32 %v777, %v747
        %v779 = vadd.f32 %v778, %v748
        %v780 = vadd.f32 %v779, %v749
        %v781 = vadd.f32 %v780, %v750
        %v782 = vadd.f32 %v781, %v751
        %v783 = vadd.f32 %v782, %v752
        %v784 = vadd.f32 %v783, %v753
        %v785 = vadd.f32 %v784, %v754
        %v786 = vadd.f32 %v785, %v755
        %v787 = vadd.f32 %v786, %v756
        %v788 = vadd.f32 %v787, %v757
        %v789 = vadd.f32 %v788, %v758
        %v790 = vadd.f32 %v789, %v759
        %v791 = vadd.f32 %v790, %v760
        %v792 = vadd.f32 %v791, %v761
        %v793 = vadd.f32 %v792, %v762
        %v794 = vadd.f32 %v793, %v763
        %v795 = vadd.f32 %v794, %v764
        %v796 = vadd.f32 %v795, %v765
        %v797 = vadd.f32 %v796, %v766
        %v798 = vadd.f32 %v797, %v767
        %v799 = vadd.f32 %v798, %v768
        %v800 = vrot.slane %v799, 4
        %v801 = vadd.f32 %v799, %v800
        %v802 = vrot.slane %v801, 2
        %v803 = vadd.f32 %v801, %v802
        %v804 = vrot.slane %v803, 1
        %v805 = vadd.f32 %v803, %v804
        %v806 = vmul.f32 %v737, %v384
        %v807 = vmul.f32 %v738, %v389
        %v808 = vmul.f32 %v739, %v394
        %v809 = vmul.f32 %v740, %v399
        %v810 = vmul.f32 %v741, %v404
        %v811 = vmul.f32 %v742, %v409
        %v812 = vmul.f32 %v743, %v414
        %v813 = vmul.f32 %v744, %v419
        %v814 = vmul.f32 %v745, %v424
        %v815 = vmul.f32 %v746, %v429
        %v816 = vmul.f32 %v747, %v434
        %v817 = vmul.f32 %v748, %v439
        %v818 = vmul.f32 %v749, %v444
        %v819 = vmul.f32 %v750, %v449
        %v820 = vmul.f32 %v751, %v454
        %v821 = vmul.f32 %v752, %v459
        %v822 = vmul.f32 %v753, %v464
        %v823 = vmul.f32 %v754, %v469
        %v824 = vmul.f32 %v755, %v474
        %v825 = vmul.f32 %v756, %v479
        %v826 = vmul.f32 %v757, %v484
        %v827 = vmul.f32 %v758, %v489
        %v828 = vmul.f32 %v759, %v494
        %v829 = vmul.f32 %v760, %v499
        %v830 = vmul.f32 %v761, %v504
        %v831 = vmul.f32 %v762, %v509
        %v832 = vmul.f32 %v763, %v514
        %v833 = vmul.f32 %v764, %v519
        %v834 = vmul.f32 %v765, %v524
        %v835 = vmul.f32 %v766, %v529
        %v836 = vmul.f32 %v767, %v534
        %v837 = vmul.f32 %v768, %v539
        %v838 = vadd.f32 %v806, %v807
        %v839 = vadd.f32 %v838, %v808
        %v840 = vadd.f32 %v839, %v809
        %v841 = vadd.f32 %v840, %v810
        %v842 = vadd.f32 %v841, %v811
        %v843 = vadd.f32 %v842, %v812
        %v844 = vadd.f32 %v843, %v813
        %v845 = vadd.f32 %v844, %v814
        %v846 = vadd.f32 %v845, %v815
        %v847 = vadd.f32 %v846, %v816
        %v848 = vadd.f32 %v847, %v817
        %v849 = vadd.f32 %v848, %v818
        %v850 = vadd.f32 %v849, %v819
        %v851 = vadd.f32 %v850, %v820
        %v852 = vadd.f32 %v851, %v821
        %v853 = vadd.f32 %v852, %v822
        %v854 = vadd.f32 %v853, %v823
        %v855 = vadd.f32 %v854, %v824
        %v856 = vadd.f32 %v855, %v825
        %v857 = vadd.f32 %v856, %v826
        %v858 = vadd.f32 %v857, %v827
        %v859 = vadd.f32 %v858, %v828
        %v860 = vadd.f32 %v859, %v829
        %v861 = vadd.f32 %v860, %v830
        %v862 = vadd.f32 %v861, %v831
        %v863 = vadd.f32 %v862, %v832
        %v864 = vadd.f32 %v863, %v833
        %v865 = vadd.f32 %v864, %v834
        %v866 = vadd.f32 %v865, %v835
        %v867 = vadd.f32 %v866, %v836
        %v868 = vadd.f32 %v867, %v837
        %v869 = vrot.slane %v868, 4
        %v870 = vadd.f32 %v868, %v869
        %v871 = vrot.slane %v870, 2
        %v872 = vadd.f32 %v870, %v871
        %v873 = vrot.slane %v872, 1
        %v874 = vadd.f32 %v872, %v873
        %vm875 = vcmask 1040384
        %v876 = vsel %vm875, %v805, %v874
        %vm877 = vcmask 1041408
        %v878 = vsel %vm877, %v876, 0.0
        %879 = vst [vmem:[%s175] sm:$0xff] %v878
        %s880 = sand.u32 %s76, 1
        %s881 = scalar_lea.sflag [#allocation3], %s880
        %s882 = sand.u32 %s76, 1
        %s883 = smul.addr %s882, 256
        %s884 = scalar_lea.vmem [#allocation2], %s883
        %s885 = sand.u32 %s102, 1
        %s886 = scalar_lea.sflag [#allocation5], %s885
        %s887 = sand.u32 %s102, 1
        %s888 = smul.addr %s887, 8
        %s889 = scalar_lea.vmem [#allocation4], %s888
        // Predicated region
        $region29: #{tpu_custom_call.1} parent=27 // pred_check
          %p890 = pneg %p86
        $region30: #{tpu_custom_call.1} parent=27 // pred_check_branch
          %892 = sbr.rel (%p890) target = $region32
        $region31: #{tpu_custom_call.1} parent=27 // pred_region
          %s893 = smul.u32 32, %s21
          %s895 = ssub.s32 4096, 4096
          %896 = vsyncadd %s881, %s895
          %s897 = smul.addr %s893, 128
          %s898 = scalar_lea.hbm %s2, %s897
          %s899 = sshll.u32 %s884, 4
          %s900 = int_to_ptr.vmem [resolvable:$true] %s899
          %905 = dma.vmem_to_hbm [thread:$0]  %s900, 4096, %s898, %s881, 128, 128, 8
        $region32: #{tpu_custom_call.1} parent=27 // pred_fallthru
          _
        // Predicated region
        $region33: #{tpu_custom_call.1} parent=27 // pred_check
          %p906 = pneg %p112
        $region34: #{tpu_custom_call.1} parent=27 // pred_check_branch
          %908 = sbr.rel (%p906) target = $region36
        $region35: #{tpu_custom_call.1} parent=27 // pred_region
          %s910 = ssub.s32 128, 128
          %911 = vsyncadd %s886, %s910
          %s912 = smul.addr %s21, 128
          %s913 = scalar_lea.hbm %s3, %s912
          %s915 = sshll.u32 %s889, 4
          %s916 = int_to_ptr.vmem [resolvable:$true] %s915
          %918 = dma.vmem_to_hbm [thread:$0]  %s916, 128, %s913, %s886
        $region36: #{tpu_custom_call.1} parent=27 // pred_fallthru
          _
      $region28: #{tpu_custom_call.1} parent=5 // pred_fallthru
        _
      %p919 = scmp.le.s32.totalorder 2, %s16
      // Predicated region
      $region37: #{tpu_custom_call.1} parent=5 // pred_check
        %p920 = pneg %p919
      $region38: #{tpu_custom_call.1} parent=5 // pred_check_branch
        %922 = sbr.rel (%p920) target = $region40
      $region39: #{tpu_custom_call.1} parent=5 // pred_region
        %s923 = ssub.s32 %s16, 2
        // Predicated region
        $region41: #{tpu_custom_call.1} parent=39 // pred_check
          %p924 = pneg %p92
        $region42: #{tpu_custom_call.1} parent=39 // pred_check_branch
          %926 = sbr.rel (%p924) target = $region44
        $region43: #{tpu_custom_call.1} parent=39 // pred_region
          %s927 = sand.u32 %s77, 1
          %s928 = scalar_lea.sflag [#allocation3], %s927
          %s929 = sand.u32 %s77, 1
          %s930 = smul.addr %s929, 256
          %s931 = scalar_lea.vmem [#allocation2], %s930
          %932 = dma.done %s928, 4096
        $region44: #{tpu_custom_call.1} parent=39 // pred_fallthru
          _
        // Predicated region
        $region45: #{tpu_custom_call.1} parent=39 // pred_check
          %p933 = pneg %p118
        $region46: #{tpu_custom_call.1} parent=39 // pred_check_branch
          %935 = sbr.rel (%p933) target = $region48
        $region47: #{tpu_custom_call.1} parent=39 // pred_region
          %s936 = sand.u32 %s103, 1
          %s937 = scalar_lea.sflag [#allocation5], %s936
          %s938 = sand.u32 %s103, 1
          %s939 = smul.addr %s938, 8
          %s940 = scalar_lea.vmem [#allocation4], %s939
          %941 = dma.done %s937, 128
        $region48: #{tpu_custom_call.1} parent=39 // pred_fallthru
          _
      $region40: #{tpu_custom_call.1} parent=5 // pred_fallthru
        _
    $region6: #{tpu_custom_call.1} parent=1 // loop_footer
      %s20 = sadd.s32 1, %s16
    $region7: #{tpu_custom_call.1} parent=1 // loop_footer_branch
      %15 = sbr.rel target = $region3
    $region8: #{tpu_custom_call.1} parent=1 // loop_exit
      _
    %942 = vsyncpa [#allocation3], 1
    %s943 = scalar_lea.sflag [#allocation3], 1
    %944 = vsyncpa %s943, 1
    %945 = vsyncpa [#allocation5], 1
    %s946 = scalar_lea.sflag [#allocation5], 1
    %947 = vsyncpa %s946, 1

</llo_original>
